<compile_context>
chip_gen: v7x
topology: tpu7x:2x2x1
jax: 0.10.0
libtpu: 0.0.40
codegen_flags: <defaults>
</compile_context>

<pallas_src>
import functools

import jax
import jax.numpy as jnp
from jax.experimental import pallas as pl
from jax.experimental.pallas import tpu as pltpu

LANE = 128


def _round_up(x, m):
    return ((x + m - 1) // m) * m


def _pad2(a, rows, cols):
    return jnp.pad(a, ((0, rows - a.shape[0]), (0, cols - a.shape[1])))


@functools.lru_cache(maxsize=None)
def _num_tensorcores():
    # v5e/v6e: 1 TensorCore per chip; v7x: 2.  Fall back to 1 if unknown.
    try:
        return max(1, int(getattr(jax.devices()[0], "num_cores", 1)))
    except Exception:  # pragma: no cover - defensive
        return 1


def _pick_tile_b(B):
    """Generation-aware batch tile.

    Single-TC chips (v5e/v6e): one grid step for small B (each extra grid step
    costs ~0.35-0.6 us, comparable to the whole kernel here); 512-2048 tiles
    for large B to stay near the HBM roofline.  Multi-TC chips (v7x): split the
    batch evenly across cores (dimension_semantics=("parallel",)) while keeping
    tiles fat.
    """
    ntc = _num_tensorcores()
    per_core = B
    if ntc > 1 and B % ntc == 0 and (B // ntc) % 8 == 0:
        per_core = B // ntc
    for cand in (2048, 1024, 512):
        if per_core % cand == 0 and per_core > cand:
            return cand
    return per_core


def actor_kernel(x_ref, w1_ref, b1_ref, w2_ref, b2_ref, w3_ref, b3_ref, o_ref):
    # bf16 matmul operands (native MXU path on v5e/v6e/v7x), f32 accumulation.
    x = x_ref[...].astype(jnp.bfloat16)

    # fc1 + ReLU   (K = state_dim, unpadded; MXU pads internally)
    h1 = jnp.dot(x, w1_ref[...], preferred_element_type=jnp.float32) + b1_ref[...]
    h1 = jnp.maximum(h1, 0.0)

    # fc2 + ReLU
    h2 = jnp.dot(h1.astype(jnp.bfloat16), w2_ref[...],
                 preferred_element_type=jnp.float32) + b2_ref[...]
    h2 = jnp.maximum(h2, 0.0)

    # fc3 -> narrow (tile_b, out_dim) logits: no padded lanes, no mask needed.
    logits = jnp.dot(h2.astype(jnp.bfloat16), w3_ref[...],
                     preferred_element_type=jnp.float32) + b3_ref[...]

    # output_act = softmax over last dim (numerically stable, exact divide so
    # probabilities sum to 1 within f32 rounding).
    m = jnp.max(logits, axis=-1, keepdims=True)
    e = jnp.exp(logits - m)
    denom = jnp.sum(e, axis=-1, keepdims=True)
    o_ref[...] = (e / denom).astype(o_ref.dtype)


def prepare_params(w1, b1, w2, b2, w3, b3):
    """One-time parameter prep (call at init, NOT per forward):
    pad the hidden dimension to a lane multiple (zeros are exact: padded hidden
    units stay 0 through ReLU and contribute nothing downstream) and cast the
    weights to bf16.  Input (state_dim) and output (out_dim) dims stay unpadded."""
    state_dim, hidden = w1.shape
    out_dim = w3.shape[1]
    hp = _round_up(hidden, LANE)

    w1p = _pad2(w1, state_dim, hp).astype(jnp.bfloat16)   # (state_dim, hp)
    w2p = _pad2(w2, hp, hp).astype(jnp.bfloat16)          # (hp, hp)
    w3p = _pad2(w3, hp, out_dim).astype(jnp.bfloat16)     # (hp, out_dim) narrow
    b1p = _pad2(b1, 1, hp)                                # f32
    b2p = _pad2(b2, 1, hp)                                # f32
    b3p = b3                                              # (1, out_dim), f32
    return w1p, b1p, w2p, b2p, w3p, b3p


@functools.partial(jax.jit, static_argnames=("tile_b",))
def actor_forward(state, w1p, b1p, w2p, b2p, w3p, b3p, *, tile_b=None):
    """state: [B, state_dim] f32 (unpadded); params from prepare_params().
    Computes softmax(relu(relu(x@W1+b1)@W2+b2)@W3+b3)."""
    B, state_dim = state.shape
    hp = w1p.shape[1]
    out_dim = w3p.shape[1]

    if tile_b is None:
        tile_b = _pick_tile_b(B)
    assert B % tile_b == 0, "batch must be divisible by tile_b"

    grid = (B // tile_b,)
    full = lambda i: (0, 0)  # weights/biases resident for every batch tile

    return pl.pallas_call(
        actor_kernel,
        out_shape=jax.ShapeDtypeStruct((B, out_dim), jnp.float32),
        grid_spec=pltpu.PrefetchScalarGridSpec(
            num_scalar_prefetch=0,
            grid=grid,
            in_specs=[
                pl.BlockSpec((tile_b, state_dim), lambda i: (i, 0)),  # x tile
                pl.BlockSpec((state_dim, hp), full),                  # W1 (bf16)
                pl.BlockSpec((1, hp), full),                          # b1
                pl.BlockSpec((hp, hp), full),                         # W2 (bf16)
                pl.BlockSpec((1, hp), full),                          # b2
                pl.BlockSpec((hp, out_dim), full),                    # W3 (bf16)
                pl.BlockSpec((1, out_dim), full),                     # b3
            ],
            out_specs=pl.BlockSpec((tile_b, out_dim), lambda i: (i, 0)),
        ),
        compiler_params=pltpu.CompilerParams(
            dimension_semantics=("parallel",),
            vmem_limit_bytes=32 * 1024 * 1024,
        ),
    )(state, w1p, b1p, w2p, b2p, w3p, b3p)


def init_params(key, state_dim, hidden_size, output_size):
    """PyTorch nn.Linear default init: U(-1/sqrt(fan_in), +1/sqrt(fan_in)).
    Weights stored as [in, out] (transposed relative to PyTorch)."""
    ks = jax.random.split(key, 6)

    def linear(kw, kb, fan_in, fan_out):
        bound = 1.0 / jnp.sqrt(fan_in)
        w = jax.random.uniform(kw, (fan_in, fan_out), jnp.float32, -bound, bound)
        b = jax.random.uniform(kb, (1, fan_out), jnp.float32, -bound, bound)
        return w, b

    w1, b1 = linear(ks[0], ks[1], state_dim, hidden_size)
    w2, b2 = linear(ks[2], ks[3], hidden_size, hidden_size)
    w3, b3 = linear(ks[4], ks[5], hidden_size, output_size)
    return w1, b1, w2, b2, w3, b3


def actor_forward_ref(state, w1, b1, w2, b2, w3, b3):
    h1 = jnp.maximum(state @ w1 + b1, 0.0)
    h2 = jnp.maximum(h1 @ w2 + b2, 0.0)
    logits = h2 @ w3 + b3
    return jax.nn.softmax(logits, axis=-1)


if __name__ == "__main__":
    state_dim, hidden_size, output_size = 16, 32, 4
    batch = 256

    key = jax.random.PRNGKey(0)
    k_params, k_state = jax.random.split(key)
    raw_params = init_params(k_params, state_dim, hidden_size, output_size)
    params = prepare_params(*raw_params)  # one-time pad + bf16 cast (hoisted)
    state = jax.random.normal(k_state, (batch, state_dim), jnp.float32)

    out = actor_forward(state, *params)
    out = jax.block_until_ready(out)

    ref = actor_forward_ref(state, *raw_params)  # f32 reference
    assert out.shape == (batch, output_size)
    # bf16 matmul operands -> slightly looser tolerance vs. the f32 reference.
    assert jnp.allclose(out, ref, atol=2e-2, rtol=0.0), "mismatch vs. reference"
    # exact divide in the softmax epilogue -> rows sum to 1 within f32 rounding.
    assert jnp.allclose(jnp.sum(out, axis=-1), 1.0, atol=1e-3), "softmax not normalized"

    print("KERNEL_OK")
</pallas_src>

<mosaic_0001>
module attributes {stable_mosaic.version = 11 : i64} {
  func.func @actor_kernel(%arg0: i32, %arg1: memref<256x16xf32, #tpu.memory_space<vmem>>, %arg2: memref<16x128xbf16, #tpu.memory_space<vmem>>, %arg3: memref<1x128xf32, #tpu.memory_space<vmem>>, %arg4: memref<128x128xbf16, #tpu.memory_space<vmem>>, %arg5: memref<1x128xf32, #tpu.memory_space<vmem>>, %arg6: memref<128x4xbf16, #tpu.memory_space<vmem>>, %arg7: memref<1x4xf32, #tpu.memory_space<vmem>>, %arg8: memref<256x4xf32, #tpu.memory_space<vmem>>) attributes {dimension_semantics = [#tpu.dimension_semantics<parallel>], iteration_bounds = array<i64: 1>, scalar_prefetch = 0 : i64, scratch_operands = 0 : i64, tpu.core_type = #tpu.core_type<tc>, window_params = [{transform_indices = @transform_0, window_bounds = array<i64: 256, 16>}, {pipeline_mode = #tpu.pipeline_mode<synchronous>, transform_indices = @transform_1, window_bounds = array<i64: 16, 128>}, {pipeline_mode = #tpu.pipeline_mode<synchronous>, transform_indices = @transform_2, window_bounds = array<i64: 1, 128>}, {pipeline_mode = #tpu.pipeline_mode<synchronous>, transform_indices = @transform_3, window_bounds = array<i64: 128, 128>}, {pipeline_mode = #tpu.pipeline_mode<synchronous>, transform_indices = @transform_4, window_bounds = array<i64: 1, 128>}, {pipeline_mode = #tpu.pipeline_mode<synchronous>, transform_indices = @transform_5, window_bounds = array<i64: 128, 4>}, {pipeline_mode = #tpu.pipeline_mode<synchronous>, transform_indices = @transform_6, window_bounds = array<i64: 1, 4>}, {transform_indices = @transform_7, window_bounds = array<i64: 256, 4>}]} {
    %c0 = arith.constant 0 : index
    %c0_0 = arith.constant 0 : index
    %0 = vector.load %arg1[%c0, %c0_0] : memref<256x16xf32, #tpu.memory_space<vmem>>, vector<256x16xf32>
    %1 = arith.truncf %0 : vector<256x16xf32> to vector<256x16xbf16>
    %c0_1 = arith.constant 0 : index
    %c0_2 = arith.constant 0 : index
    %2 = vector.load %arg2[%c0_1, %c0_2] : memref<16x128xbf16, #tpu.memory_space<vmem>>, vector<16x128xbf16>
    %cst = arith.constant dense<0.000000e+00> : vector<256x128xf32>
    %3 = tpu.matmul %1, %2, %cst {dimension_numbers = #tpu.dot_dimension_numbers<[1], [0], [0], [1], [0, 0, 1, 1], [], []>} : vector<256x16xbf16>, vector<16x128xbf16>, vector<256x128xf32> -> vector<256x128xf32>
    %c0_3 = arith.constant 0 : index
    %c0_4 = arith.constant 0 : index
    %4 = vector.load %arg3[%c0_3, %c0_4] : memref<1x128xf32, #tpu.memory_space<vmem>>, vector<1x128xf32>
    %5 = vector.broadcast %4 : vector<1x128xf32> to vector<256x128xf32>
    %6 = arith.addf %3, %5 : vector<256x128xf32>
    %cst_5 = arith.constant 0.000000e+00 : f32
    %7 = vector.broadcast %cst_5 : f32 to vector<256x128xf32>
    %8 = arith.maximumf %6, %7 : vector<256x128xf32>
    %9 = arith.truncf %8 : vector<256x128xf32> to vector<256x128xbf16>
    %c0_6 = arith.constant 0 : index
    %c0_7 = arith.constant 0 : index
    %10 = vector.load %arg4[%c0_6, %c0_7] : memref<128x128xbf16, #tpu.memory_space<vmem>>, vector<128x128xbf16>
    %cst_8 = arith.constant dense<0.000000e+00> : vector<256x128xf32>
    %11 = tpu.matmul %9, %10, %cst_8 {dimension_numbers = #tpu.dot_dimension_numbers<[1], [0], [0], [1], [0, 0, 1, 1], [], []>} : vector<256x128xbf16>, vector<128x128xbf16>, vector<256x128xf32> -> vector<256x128xf32>
    %c0_9 = arith.constant 0 : index
    %c0_10 = arith.constant 0 : index
    %12 = vector.load %arg5[%c0_9, %c0_10] : memref<1x128xf32, #tpu.memory_space<vmem>>, vector<1x128xf32>
    %13 = vector.broadcast %12 : vector<1x128xf32> to vector<256x128xf32>
    %14 = arith.addf %11, %13 : vector<256x128xf32>
    %cst_11 = arith.constant 0.000000e+00 : f32
    %15 = vector.broadcast %cst_11 : f32 to vector<256x128xf32>
    %16 = arith.maximumf %14, %15 : vector<256x128xf32>
    %17 = arith.truncf %16 : vector<256x128xf32> to vector<256x128xbf16>
    %c0_12 = arith.constant 0 : index
    %c0_13 = arith.constant 0 : index
    %18 = vector.load %arg6[%c0_12, %c0_13] : memref<128x4xbf16, #tpu.memory_space<vmem>>, vector<128x4xbf16>
    %cst_14 = arith.constant dense<0.000000e+00> : vector<256x4xf32>
    %19 = tpu.matmul %17, %18, %cst_14 {dimension_numbers = #tpu.dot_dimension_numbers<[1], [0], [0], [1], [0, 0, 1, 1], [], []>} : vector<256x128xbf16>, vector<128x4xbf16>, vector<256x4xf32> -> vector<256x4xf32>
    %c0_15 = arith.constant 0 : index
    %c0_16 = arith.constant 0 : index
    %20 = vector.load %arg7[%c0_15, %c0_16] : memref<1x4xf32, #tpu.memory_space<vmem>>, vector<1x4xf32>
    %21 = vector.broadcast %20 : vector<1x4xf32> to vector<256x4xf32>
    %22 = arith.addf %19, %21 : vector<256x4xf32>
    %cst_17 = arith.constant dense<0xFF800000> : vector<256xf32>
    %23 = vector.multi_reduction <maximumf>, %22, %cst_17 [1] : vector<256x4xf32> to vector<256xf32>
    %24 = vector.shape_cast %23 : vector<256xf32> to vector<256x1xf32>
    %25 = vector.broadcast %24 : vector<256x1xf32> to vector<256x4xf32>
    %26 = arith.subf %22, %25 : vector<256x4xf32>
    %27 = math.exp %26 : vector<256x4xf32>
    %cst_18 = arith.constant dense<0.000000e+00> : vector<256xf32>
    %28 = vector.multi_reduction <add>, %27, %cst_18 [1] : vector<256x4xf32> to vector<256xf32>
    %29 = vector.shape_cast %28 : vector<256xf32> to vector<256x1xf32>
    %30 = vector.broadcast %29 : vector<256x1xf32> to vector<256x4xf32>
    %31 = arith.divf %27, %30 : vector<256x4xf32>
    %c0_19 = arith.constant 0 : index
    %c0_20 = arith.constant 0 : index
    %32 = vector.load %arg8[%c0_19, %c0_20] : memref<256x4xf32, #tpu.memory_space<vmem>>, vector<256x4xf32>
    tpu.vector_store %arg8[%c0_19, %c0_20], %31 {strides = array<i32>} : memref<256x4xf32, #tpu.memory_space<vmem>>, vector<256x4xf32>,
    return
  }
  func.func @transform_0(%arg0: i32) -> (i32, i32) {
    %c0_i32 = arith.constant 0 : i32
    %c0_i32_0 = arith.constant 0 : i32
    return %arg0, %c0_i32 : i32, i32
  }
  func.func @transform_1(%arg0: i32) -> (i32, i32) {
    %c0_i32 = arith.constant 0 : i32
    %c0_i32_0 = arith.constant 0 : i32
    %c0_i32_1 = arith.constant 0 : i32
    return %c0_i32, %c0_i32_0 : i32, i32
  }
  func.func @transform_2(%arg0: i32) -> (i32, i32) {
    %c0_i32 = arith.constant 0 : i32
    %c0_i32_0 = arith.constant 0 : i32
    %c0_i32_1 = arith.constant 0 : i32
    return %c0_i32, %c0_i32_0 : i32, i32
  }
  func.func @transform_3(%arg0: i32) -> (i32, i32) {
    %c0_i32 = arith.constant 0 : i32
    %c0_i32_0 = arith.constant 0 : i32
    %c0_i32_1 = arith.constant 0 : i32
    return %c0_i32, %c0_i32_0 : i32, i32
  }
  func.func @transform_4(%arg0: i32) -> (i32, i32) {
    %c0_i32 = arith.constant 0 : i32
    %c0_i32_0 = arith.constant 0 : i32
    %c0_i32_1 = arith.constant 0 : i32
    return %c0_i32, %c0_i32_0 : i32, i32
  }
  func.func @transform_5(%arg0: i32) -> (i32, i32) {
    %c0_i32 = arith.constant 0 : i32
    %c0_i32_0 = arith.constant 0 : i32
    %c0_i32_1 = arith.constant 0 : i32
    return %c0_i32, %c0_i32_0 : i32, i32
  }
  func.func @transform_6(%arg0: i32) -> (i32, i32) {
    %c0_i32 = arith.constant 0 : i32
    %c0_i32_0 = arith.constant 0 : i32
    %c0_i32_1 = arith.constant 0 : i32
    return %c0_i32, %c0_i32_0 : i32, i32
  }
  func.func @transform_7(%arg0: i32) -> (i32, i32) {
    %c0_i32 = arith.constant 0 : i32
    %c0_i32_0 = arith.constant 0 : i32
    return %arg0, %c0_i32 : i32, i32
  }
}

</mosaic_0001>

<llo_original>
// kernel: actor_forward.1
$region0: #{actor_forward.1}
  #allocation0 [shape = 'u32[]', space=smem, size = 0x4, offset = 0x4, fixed_abs, tag = 'smem constant byte address 0x4 - core index']
  #allocation1 [shape = 'u32[144,128]{1,0:T(1,128)}', space=vmem, size = 0x12000, scoped, tag = 'internal scratch']
  %s0 = inlined_call_operand.vmem [shape: f32[256,16], index: 0, kind: input, shape index: {}]
  %s1 = inlined_call_operand.vmem [shape: bf16[16,128], index: 1, kind: input, shape index: {}]
  %s2 = inlined_call_operand.vmem [shape: f32[1,128], index: 2, kind: input, shape index: {}]
  %s3 = inlined_call_operand.vmem [shape: bf16[128,128], index: 3, kind: input, shape index: {}]
  %s4 = inlined_call_operand.vmem [shape: f32[1,128], index: 4, kind: input, shape index: {}]
  %s5 = inlined_call_operand.vmem [shape: bf16[128,4], index: 5, kind: input, shape index: {}]
  %s6 = inlined_call_operand.vmem [shape: f32[1,4], index: 6, kind: input, shape index: {}]
  %s7 = inlined_call_operand.vmem [shape: f32[256,4], index: 7, kind: output, shape index: {}]
  %s8 = sld [smem:[#allocation0]]
  $region38: #{actor_forward.1} parent=0
    _
  %s10 = ssub.s32 1, %s8
  %s11 = scalar_select 0, %s10, %s8
  // Predicated region
  $region2: #{actor_forward.1} parent=0 // pred_check
    _
  $region3: #{actor_forward.1} parent=0 // pred_check_branch
    %13 = sbr.rel (0) target = $region5
  $region4: #{actor_forward.1} parent=0 // pred_region
    _
  $region5: #{actor_forward.1} parent=0 // pred_fallthru
    _
  // Predicated region
  $region6: #{actor_forward.1} parent=0 // pred_check
    _
  $region7: #{actor_forward.1} parent=0 // pred_check_branch
    %15 = sbr.rel (0) target = $region9
  $region8: #{actor_forward.1} parent=0 // pred_region
    _
  $region9: #{actor_forward.1} parent=0 // pred_fallthru
    _
  // Predicated region
  $region10: #{actor_forward.1} parent=0 // pred_check
    _
  $region11: #{actor_forward.1} parent=0 // pred_check_branch
    %17 = sbr.rel (0) target = $region13
  $region12: #{actor_forward.1} parent=0 // pred_region
    _
  $region13: #{actor_forward.1} parent=0 // pred_fallthru
    _
  // Predicated region
  $region14: #{actor_forward.1} parent=0 // pred_check
    _
  $region15: #{actor_forward.1} parent=0 // pred_check_branch
    %19 = sbr.rel (0) target = $region17
  $region16: #{actor_forward.1} parent=0 // pred_region
    _
  $region17: #{actor_forward.1} parent=0 // pred_fallthru
    _
  // Predicated region
  $region18: #{actor_forward.1} parent=0 // pred_check
    _
  $region19: #{actor_forward.1} parent=0 // pred_check_branch
    %21 = sbr.rel (0) target = $region21
  $region20: #{actor_forward.1} parent=0 // pred_region
    _
  $region21: #{actor_forward.1} parent=0 // pred_fallthru
    _
  // Predicated region
  $region22: #{actor_forward.1} parent=0 // pred_check
    _
  $region23: #{actor_forward.1} parent=0 // pred_check_branch
    %23 = sbr.rel (0) target = $region25
  $region24: #{actor_forward.1} parent=0 // pred_region
    _
  $region25: #{actor_forward.1} parent=0 // pred_fallthru
    _
  // Predicated region
  $region26: #{actor_forward.1} parent=0 // pred_check
    _
  $region27: #{actor_forward.1} parent=0 // pred_check_branch
    %25 = sbr.rel (0) target = $region29
  $region28: #{actor_forward.1} parent=0 // pred_region
    _
  $region29: #{actor_forward.1} parent=0 // pred_fallthru
    _
  %v27 = vld [vmem:[%s0] sm:$0xff]
  %v28 = vld [vmem:[%s0 + $0x8] sm:$0xff]
  %v29 = vld [vmem:[%s0 + $0x10] sm:$0xff]
  %v30 = vld [vmem:[%s0 + $0x18] sm:$0xff]
  %v31 = vld [vmem:[%s0 + $0x20] sm:$0xff]
  %v32 = vld [vmem:[%s0 + $0x28] sm:$0xff]
  %v33 = vld [vmem:[%s0 + $0x30] sm:$0xff]
  %v34 = vld [vmem:[%s0 + $0x38] sm:$0xff]
  %v35 = vld [vmem:[%s0 + $0x40] sm:$0xff]
  %v36 = vld [vmem:[%s0 + $0x48] sm:$0xff]
  %v37 = vld [vmem:[%s0 + $0x50] sm:$0xff]
  %v38 = vld [vmem:[%s0 + $0x58] sm:$0xff]
  %v39 = vld [vmem:[%s0 + $0x60] sm:$0xff]
  %v40 = vld [vmem:[%s0 + $0x68] sm:$0xff]
  %v41 = vld [vmem:[%s0 + $0x70] sm:$0xff]
  %v42 = vld [vmem:[%s0 + $0x78] sm:$0xff]
  %v43 = vld [vmem:[%s0 + $0x80] sm:$0xff]
  %v44 = vld [vmem:[%s0 + $0x88] sm:$0xff]
  %v45 = vld [vmem:[%s0 + $0x90] sm:$0xff]
  %v46 = vld [vmem:[%s0 + $0x98] sm:$0xff]
  %v47 = vld [vmem:[%s0 + $0xa0] sm:$0xff]
  %v48 = vld [vmem:[%s0 + $0xa8] sm:$0xff]
  %v49 = vld [vmem:[%s0 + $0xb0] sm:$0xff]
  %v50 = vld [vmem:[%s0 + $0xb8] sm:$0xff]
  %v51 = vld [vmem:[%s0 + $0xc0] sm:$0xff]
  %v52 = vld [vmem:[%s0 + $0xc8] sm:$0xff]
  %v53 = vld [vmem:[%s0 + $0xd0] sm:$0xff]
  %v54 = vld [vmem:[%s0 + $0xd8] sm:$0xff]
  %v55 = vld [vmem:[%s0 + $0xe0] sm:$0xff]
  %v56 = vld [vmem:[%s0 + $0xe8] sm:$0xff]
  %v57 = vld [vmem:[%s0 + $0xf0] sm:$0xff]
  %v58 = vld [vmem:[%s0 + $0xf8] sm:$0xff]
  %v59 = vpack.c.bf16 %v28, %v27
  %v60 = vpack.c.bf16 %v30, %v29
  %v61 = vpack.c.bf16 %v32, %v31
  %v62 = vpack.c.bf16 %v34, %v33
  %v63 = vpack.c.bf16 %v36, %v35
  %v64 = vpack.c.bf16 %v38, %v37
  %v65 = vpack.c.bf16 %v40, %v39
  %v66 = vpack.c.bf16 %v42, %v41
  %v67 = vpack.c.bf16 %v44, %v43
  %v68 = vpack.c.bf16 %v46, %v45
  %v69 = vpack.c.bf16 %v48, %v47
  %v70 = vpack.c.bf16 %v50, %v49
  %v71 = vpack.c.bf16 %v52, %v51
  %v72 = vpack.c.bf16 %v54, %v53
  %v73 = vpack.c.bf16 %v56, %v55
  %v74 = vpack.c.bf16 %v58, %v57
  %v75 = vld [vmem:[%s1] sm:$0xf]
  %v76 = vld [vmem:[%s1 + $0x4] sm:$0xf]
  %v77 = vld [vmem:[%s2] sm:$0x1]
  %v79 = vlaneseq
  %v80 = vshrl.u32 %v79, 7
  %v81 = vsub.s32 0, %v80
  %v82 = vrot.slane %v77, %v81
  %v86 = vunpack.c.l.b16 %v75
  %v87 = vunpack.c.l.b16 %v76
  %v88 = vpack.c.b16 %v87, %v86
  %vm90 = vcmask 130048
  %v92 = vsel %vm90, %v59, 0
  %v95 = vsel %vm90, %v60, 0
  %v98 = vsel %vm90, %v61, 0
  %v101 = vsel %vm90, %v62, 0
  %v104 = vsel %vm90, %v63, 0
  %v107 = vsel %vm90, %v64, 0
  %v110 = vsel %vm90, %v65, 0
  %v113 = vsel %vm90, %v66, 0
  %v116 = vsel %vm90, %v67, 0
  %v119 = vsel %vm90, %v68, 0
  %v122 = vsel %vm90, %v69, 0
  %v125 = vsel %vm90, %v70, 0
  %v128 = vsel %vm90, %v71, 0
  %v131 = vsel %vm90, %v72, 0
  %v134 = vsel %vm90, %v73, 0
  %v137 = vsel %vm90, %v74, 0
  %139 = vmatprep.subr.bf16.mxu0 0
  %140 = vmatpush1.bf16.msra.mxu0 %v88
  %141 = vmatprep.subr.bf16.mxu0 0
  %142 = vmatpush1.bf16.msra.mxu0 0
  %143 = vmatprep.subr.bf16.mxu0 0
  %144 = vmatpush1.bf16.msra.mxu0 0
  %145 = vmatprep.subr.bf16.mxu0 0
  %146 = vmatpush1.bf16.msra.mxu0 0
  %147 = vmatprep.subr.bf16.mxu0 0
  %148 = vmatpush1.bf16.msra.mxu0 0
  %149 = vmatprep.subr.bf16.mxu0 0
  %150 = vmatpush1.bf16.msra.mxu0 0
  %151 = vmatprep.subr.bf16.mxu0 0
  %152 = vmatpush1.bf16.msra.mxu0 0
  %153 = vmatprep.subr.bf16.mxu0 0
  %154 = vmatpush1.bf16.msra.mxu0 0
  %155 = vmatprep.subr.bf16.mxu0 0
  %156 = vmatpush1.bf16.msra.mxu0 0
  %157 = vmatprep.subr.bf16.mxu0 0
  %158 = vmatpush1.bf16.msra.mxu0 0
  %159 = vmatprep.subr.bf16.mxu0 0
  %160 = vmatpush1.bf16.msra.mxu0 0
  %161 = vmatprep.subr.bf16.mxu0 0
  %162 = vmatpush1.bf16.msra.mxu0 0
  %163 = vmatprep.subr.bf16.mxu0 0
  %164 = vmatpush1.bf16.msra.mxu0 0
  %165 = vmatprep.subr.bf16.mxu0 0
  %166 = vmatpush1.bf16.msra.mxu0 0
  %167 = vmatprep.subr.bf16.mxu0 0
  %168 = vmatpush1.bf16.msra.mxu0 0
  %169 = vmatprep.subr.bf16.mxu0 0
  %170 = vmatpush1.bf16.msra.mxu0 0
  %171 = vmatprep.mubr.bf16.mxu0 0
  %172 = vmatmul.mubr.bf16.gmra.mrb[0].mxu0 %v92
  %v173 = vpop.f32.mrb[0].mxu0
  %v174 = vadd.f32 %v82, %v173
  %v175 = vpop.f32.mrb[0].mxu0
  %v176 = vpop.f32.mrb[0].mxu0
  %v177 = vadd.f32 %v82, %v176
  %v178 = vpop.f32.mrb[0].mxu0
  %179 = vmatprep.mubr.bf16.mxu0 0
  %180 = vmatmul.mubr.bf16.gmra.mrb[0].mxu0 %v95
  %v181 = vpop.f32.mrb[0].mxu0
  %v182 = vadd.f32 %v82, %v181
  %v183 = vpop.f32.mrb[0].mxu0
  %v184 = vpop.f32.mrb[0].mxu0
  %v185 = vadd.f32 %v82, %v184
  %v186 = vpop.f32.mrb[0].mxu0
  %187 = vmatprep.mubr.bf16.mxu0 0
  %188 = vmatmul.mubr.bf16.gmra.mrb[0].mxu0 %v98
  %v189 = vpop.f32.mrb[0].mxu0
  %v190 = vadd.f32 %v82, %v189
  %v191 = vpop.f32.mrb[0].mxu0
  %v192 = vpop.f32.mrb[0].mxu0
  %v193 = vadd.f32 %v82, %v192
  %v194 = vpop.f32.mrb[0].mxu0
  %195 = vmatprep.mubr.bf16.mxu0 0
  %196 = vmatmul.mubr.bf16.gmra.mrb[0].mxu0 %v101
  %v197 = vpop.f32.mrb[0].mxu0
  %v198 = vadd.f32 %v82, %v197
  %v199 = vpop.f32.mrb[0].mxu0
  %v200 = vpop.f32.mrb[0].mxu0
  %v201 = vadd.f32 %v82, %v200
  %v202 = vpop.f32.mrb[0].mxu0
  %203 = vmatprep.mubr.bf16.mxu0 0
  %204 = vmatmul.mubr.bf16.gmra.mrb[0].mxu0 %v104
  %v205 = vpop.f32.mrb[0].mxu0
  %v206 = vadd.f32 %v82, %v205
  %v207 = vpop.f32.mrb[0].mxu0
  %v208 = vpop.f32.mrb[0].mxu0
  %v209 = vadd.f32 %v82, %v208
  %v210 = vpop.f32.mrb[0].mxu0
  %211 = vmatprep.mubr.bf16.mxu0 0
  %212 = vmatmul.mubr.bf16.gmra.mrb[0].mxu0 %v107
  %v213 = vpop.f32.mrb[0].mxu0
  %v214 = vadd.f32 %v82, %v213
  %v215 = vpop.f32.mrb[0].mxu0
  %v216 = vpop.f32.mrb[0].mxu0
  %v217 = vadd.f32 %v82, %v216
  %v218 = vpop.f32.mrb[0].mxu0
  %219 = vmatprep.mubr.bf16.mxu0 0
  %220 = vmatmul.mubr.bf16.gmra.mrb[0].mxu0 %v110
  %v221 = vpop.f32.mrb[0].mxu0
  %v222 = vadd.f32 %v82, %v221
  %v223 = vpop.f32.mrb[0].mxu0
  %v224 = vpop.f32.mrb[0].mxu0
  %v225 = vadd.f32 %v82, %v224
  %v226 = vpop.f32.mrb[0].mxu0
  %227 = vmatprep.mubr.bf16.mxu0 0
  %228 = vmatmul.mubr.bf16.gmra.mrb[0].mxu0 %v113
  %v229 = vpop.f32.mrb[0].mxu0
  %v230 = vadd.f32 %v82, %v229
  %v231 = vpop.f32.mrb[0].mxu0
  %v232 = vpop.f32.mrb[0].mxu0
  %v233 = vadd.f32 %v82, %v232
  %v234 = vpop.f32.mrb[0].mxu0
  %235 = vmatprep.mubr.bf16.mxu0 0
  %236 = vmatmul.mubr.bf16.gmra.mrb[0].mxu0 %v116
  %v237 = vpop.f32.mrb[0].mxu0
  %v238 = vadd.f32 %v82, %v237
  %v239 = vpop.f32.mrb[0].mxu0
  %v240 = vpop.f32.mrb[0].mxu0
  %v241 = vadd.f32 %v82, %v240
  %v242 = vpop.f32.mrb[0].mxu0
  %243 = vmatprep.mubr.bf16.mxu0 0
  %244 = vmatmul.mubr.bf16.gmra.mrb[0].mxu0 %v119
  %v245 = vpop.f32.mrb[0].mxu0
  %v246 = vadd.f32 %v82, %v245
  %v247 = vpop.f32.mrb[0].mxu0
  %v248 = vpop.f32.mrb[0].mxu0
  %v249 = vadd.f32 %v82, %v248
  %v250 = vpop.f32.mrb[0].mxu0
  %251 = vmatprep.mubr.bf16.mxu0 0
  %252 = vmatmul.mubr.bf16.gmra.mrb[0].mxu0 %v122
  %v253 = vpop.f32.mrb[0].mxu0
  %v254 = vadd.f32 %v82, %v253
  %v255 = vpop.f32.mrb[0].mxu0
  %v256 = vpop.f32.mrb[0].mxu0
  %v257 = vadd.f32 %v82, %v256
  %v258 = vpop.f32.mrb[0].mxu0
  %259 = vmatprep.mubr.bf16.mxu0 0
  %260 = vmatmul.mubr.bf16.gmra.mrb[0].mxu0 %v125
  %v261 = vpop.f32.mrb[0].mxu0
  %v262 = vadd.f32 %v82, %v261
  %v263 = vpop.f32.mrb[0].mxu0
  %v264 = vpop.f32.mrb[0].mxu0
  %v265 = vadd.f32 %v82, %v264
  %v266 = vpop.f32.mrb[0].mxu0
  %267 = vmatprep.mubr.bf16.mxu0 0
  %268 = vmatmul.mubr.bf16.gmra.mrb[0].mxu0 %v128
  %v269 = vpop.f32.mrb[0].mxu0
  %v270 = vadd.f32 %v82, %v269
  %v271 = vpop.f32.mrb[0].mxu0
  %v272 = vpop.f32.mrb[0].mxu0
  %v273 = vadd.f32 %v82, %v272
  %v274 = vpop.f32.mrb[0].mxu0
  %275 = vmatprep.mubr.bf16.mxu0 0
  %276 = vmatmul.mubr.bf16.gmra.mrb[0].mxu0 %v131
  %v277 = vpop.f32.mrb[0].mxu0
  %v278 = vadd.f32 %v82, %v277
  %v279 = vpop.f32.mrb[0].mxu0
  %v280 = vpop.f32.mrb[0].mxu0
  %v281 = vadd.f32 %v82, %v280
  %v282 = vpop.f32.mrb[0].mxu0
  %283 = vmatprep.mubr.bf16.mxu0 0
  %284 = vmatmul.mubr.bf16.gmra.mrb[0].mxu0 %v134
  %v285 = vpop.f32.mrb[0].mxu0
  %v286 = vadd.f32 %v82, %v285
  %v287 = vpop.f32.mrb[0].mxu0
  %v288 = vpop.f32.mrb[0].mxu0
  %v289 = vadd.f32 %v82, %v288
  %v290 = vpop.f32.mrb[0].mxu0
  %291 = vmatprep.mubr.bf16.mxu0 0
  %292 = vmatmul.mubr.bf16.gmra.mrb[0].mxu0 %v137
  %v293 = vpop.f32.mrb[0].mxu0
  %v294 = vadd.f32 %v82, %v293
  %v295 = vpop.f32.mrb[0].mxu0
  %v296 = vpop.f32.mrb[0].mxu0
  %v297 = vadd.f32 %v82, %v296
  %v298 = vpop.f32.mrb[0].mxu0
  %299 = vdwg.mxu0
  %v300 = vmax.f32 %v174, 0.0
  %v301 = vmax.f32 %v177, 0.0
  %v302 = vmax.f32 %v182, 0.0
  %v303 = vmax.f32 %v185, 0.0
  %v304 = vmax.f32 %v190, 0.0
  %v305 = vmax.f32 %v193, 0.0
  %v306 = vmax.f32 %v198, 0.0
  %v307 = vmax.f32 %v201, 0.0
  %v308 = vmax.f32 %v206, 0.0
  %v309 = vmax.f32 %v209, 0.0
  %v310 = vmax.f32 %v214, 0.0
  %v311 = vmax.f32 %v217, 0.0
  %v312 = vmax.f32 %v222, 0.0
  %v313 = vmax.f32 %v225, 0.0
  %v314 = vmax.f32 %v230, 0.0
  %v315 = vmax.f32 %v233, 0.0
  %v316 = vmax.f32 %v238, 0.0
  %v317 = vmax.f32 %v241, 0.0
  %v318 = vmax.f32 %v246, 0.0
  %v319 = vmax.f32 %v249, 0.0
  %v320 = vmax.f32 %v254, 0.0
  %v321 = vmax.f32 %v257, 0.0
  %v322 = vmax.f32 %v262, 0.0
  %v323 = vmax.f32 %v265, 0.0
  %v324 = vmax.f32 %v270, 0.0
  %v325 = vmax.f32 %v273, 0.0
  %v326 = vmax.f32 %v278, 0.0
  %v327 = vmax.f32 %v281, 0.0
  %v328 = vmax.f32 %v286, 0.0
  %v329 = vmax.f32 %v289, 0.0
  %v330 = vmax.f32 %v294, 0.0
  %v331 = vmax.f32 %v297, 0.0
  %v332 = vpack.c.bf16 %v301, %v300
  %v333 = vpack.c.bf16 %v303, %v302
  %v334 = vpack.c.bf16 %v305, %v304
  %v335 = vpack.c.bf16 %v307, %v306
  %v336 = vpack.c.bf16 %v309, %v308
  %v337 = vpack.c.bf16 %v311, %v310
  %v338 = vpack.c.bf16 %v313, %v312
  %v339 = vpack.c.bf16 %v315, %v314
  %v340 = vpack.c.bf16 %v317, %v316
  %v341 = vpack.c.bf16 %v319, %v318
  %v342 = vpack.c.bf16 %v321, %v320
  %v343 = vpack.c.bf16 %v323, %v322
  %v344 = vpack.c.bf16 %v325, %v324
  %v345 = vpack.c.bf16 %v327, %v326
  %v346 = vpack.c.bf16 %v329, %v328
  %v347 = vpack.c.bf16 %v331, %v330
  %v348 = vld [vmem:[%s3] sm:$0xf]
  %v349 = vld [vmem:[%s3 + $0x4] sm:$0xf]
  %v350 = vld [vmem:[%s3 + $0x8] sm:$0xf]
  %v351 = vld [vmem:[%s3 + $0xc] sm:$0xf]
  %v352 = vld [vmem:[%s3 + $0x10] sm:$0xf]
  %v353 = vld [vmem:[%s3 + $0x14] sm:$0xf]
  %v354 = vld [vmem:[%s3 + $0x18] sm:$0xf]
  %v355 = vld [vmem:[%s3 + $0x1c] sm:$0xf]
  %v356 = vld [vmem:[%s3 + $0x20] sm:$0xf]
  %v357 = vld [vmem:[%s3 + $0x24] sm:$0xf]
  %v358 = vld [vmem:[%s3 + $0x28] sm:$0xf]
  %v359 = vld [vmem:[%s3 + $0x2c] sm:$0xf]
  %v360 = vld [vmem:[%s3 + $0x30] sm:$0xf]
  %v361 = vld [vmem:[%s3 + $0x34] sm:$0xf]
  %v362 = vld [vmem:[%s3 + $0x38] sm:$0xf]
  %v363 = vld [vmem:[%s3 + $0x3c] sm:$0xf]
  %v364 = vld [vmem:[%s4] sm:$0x1]
  %v366 = vlaneseq
  %v367 = vshrl.u32 %v366, 7
  %v368 = vsub.s32 0, %v367
  %v369 = vrot.slane %v364, %v368
  %v387 = vunpack.c.l.b16 %v348
  %v388 = vunpack.c.l.b16 %v349
  %v389 = vunpack.c.l.b16 %v350
  %v390 = vunpack.c.l.b16 %v351
  %v391 = vunpack.c.l.b16 %v352
  %v392 = vunpack.c.l.b16 %v353
  %v393 = vunpack.c.l.b16 %v354
  %v394 = vunpack.c.l.b16 %v355
  %v395 = vunpack.c.l.b16 %v356
  %v396 = vunpack.c.l.b16 %v357
  %v397 = vunpack.c.l.b16 %v358
  %v398 = vunpack.c.l.b16 %v359
  %v399 = vunpack.c.l.b16 %v360
  %v400 = vunpack.c.l.b16 %v361
  %v401 = vunpack.c.l.b16 %v362
  %v402 = vunpack.c.l.b16 %v363
  %v403 = vpack.c.b16 %v388, %v387
  %v404 = vpack.c.b16 %v390, %v389
  %v405 = vpack.c.b16 %v392, %v391
  %v406 = vpack.c.b16 %v394, %v393
  %v407 = vpack.c.b16 %v396, %v395
  %v408 = vpack.c.b16 %v398, %v397
  %v409 = vpack.c.b16 %v400, %v399
  %v410 = vpack.c.b16 %v402, %v401
  %419 = vmatprep.subr.bf16.mxu0 0
  %420 = vmatpush1.bf16.msra.mxu0 %v403
  %421 = vmatprep.subr.bf16.mxu0 0
  %422 = vmatpush1.bf16.msra.mxu0 %v404
  %423 = vmatprep.subr.bf16.mxu0 0
  %424 = vmatpush1.bf16.msra.mxu0 %v405
  %425 = vmatprep.subr.bf16.mxu0 0
  %426 = vmatpush1.bf16.msra.mxu0 %v406
  %427 = vmatprep.subr.bf16.mxu0 0
  %428 = vmatpush1.bf16.msra.mxu0 %v407
  %429 = vmatprep.subr.bf16.mxu0 0
  %430 = vmatpush1.bf16.msra.mxu0 %v408
  %431 = vmatprep.subr.bf16.mxu0 0
  %432 = vmatpush1.bf16.msra.mxu0 %v409
  %433 = vmatprep.subr.bf16.mxu0 0
  %434 = vmatpush1.bf16.msra.mxu0 %v410
  %435 = vmatprep.subr.bf16.mxu0 0
  %436 = vmatpush1.bf16.msra.mxu0 0
  %437 = vmatprep.subr.bf16.mxu0 0
  %438 = vmatpush1.bf16.msra.mxu0 0
  %439 = vmatprep.subr.bf16.mxu0 0
  %440 = vmatpush1.bf16.msra.mxu0 0
  %441 = vmatprep.subr.bf16.mxu0 0
  %442 = vmatpush1.bf16.msra.mxu0 0
  %443 = vmatprep.subr.bf16.mxu0 0
  %444 = vmatpush1.bf16.msra.mxu0 0
  %445 = vmatprep.subr.bf16.mxu0 0
  %446 = vmatpush1.bf16.msra.mxu0 0
  %447 = vmatprep.subr.bf16.mxu0 0
  %448 = vmatpush1.bf16.msra.mxu0 0
  %449 = vmatprep.subr.bf16.mxu0 0
  %450 = vmatpush1.bf16.msra.mxu0 0
  %451 = vmatprep.mubr.bf16.mxu0 0
  %452 = vmatmul.mubr.bf16.gmra.mrb[0].mxu0 %v332
  %v453 = vpop.f32.mrb[0].mxu0
  %v454 = vadd.f32 %v369, %v453
  %v455 = vpop.f32.mrb[0].mxu0
  %v456 = vpop.f32.mrb[0].mxu0
  %v457 = vadd.f32 %v369, %v456
  %v458 = vpop.f32.mrb[0].mxu0
  %459 = vmatprep.mubr.bf16.mxu0 0
  %460 = vmatmul.mubr.bf16.gmra.mrb[0].mxu0 %v333
  %v461 = vpop.f32.mrb[0].mxu0
  %v462 = vadd.f32 %v369, %v461
  %v463 = vpop.f32.mrb[0].mxu0
  %v464 = vpop.f32.mrb[0].mxu0
  %v465 = vadd.f32 %v369, %v464
  %v466 = vpop.f32.mrb[0].mxu0
  %467 = vmatprep.mubr.bf16.mxu0 0
  %468 = vmatmul.mubr.bf16.gmra.mrb[0].mxu0 %v334
  %v469 = vpop.f32.mrb[0].mxu0
  %v470 = vadd.f32 %v369, %v469
  %v471 = vpop.f32.mrb[0].mxu0
  %v472 = vpop.f32.mrb[0].mxu0
  %v473 = vadd.f32 %v369, %v472
  %v474 = vpop.f32.mrb[0].mxu0
  %475 = vmatprep.mubr.bf16.mxu0 0
  %476 = vmatmul.mubr.bf16.gmra.mrb[0].mxu0 %v335
  %v477 = vpop.f32.mrb[0].mxu0
  %v478 = vadd.f32 %v369, %v477
  %v479 = vpop.f32.mrb[0].mxu0
  %v480 = vpop.f32.mrb[0].mxu0
  %v481 = vadd.f32 %v369, %v480
  %v482 = vpop.f32.mrb[0].mxu0
  %483 = vmatprep.mubr.bf16.mxu0 0
  %484 = vmatmul.mubr.bf16.gmra.mrb[0].mxu0 %v336
  %v485 = vpop.f32.mrb[0].mxu0
  %v486 = vadd.f32 %v369, %v485
  %v487 = vpop.f32.mrb[0].mxu0
  %v488 = vpop.f32.mrb[0].mxu0
  %v489 = vadd.f32 %v369, %v488
  %v490 = vpop.f32.mrb[0].mxu0
  %491 = vmatprep.mubr.bf16.mxu0 0
  %492 = vmatmul.mubr.bf16.gmra.mrb[0].mxu0 %v337
  %v493 = vpop.f32.mrb[0].mxu0
  %v494 = vadd.f32 %v369, %v493
  %v495 = vpop.f32.mrb[0].mxu0
  %v496 = vpop.f32.mrb[0].mxu0
  %v497 = vadd.f32 %v369, %v496
  %v498 = vpop.f32.mrb[0].mxu0
  %499 = vmatprep.mubr.bf16.mxu0 0
  %500 = vmatmul.mubr.bf16.gmra.mrb[0].mxu0 %v338
  %v501 = vpop.f32.mrb[0].mxu0
  %v502 = vadd.f32 %v369, %v501
  %v503 = vpop.f32.mrb[0].mxu0
  %v504 = vpop.f32.mrb[0].mxu0
  %v505 = vadd.f32 %v369, %v504
  %v506 = vpop.f32.mrb[0].mxu0
  %507 = vmatprep.mubr.bf16.mxu0 0
  %508 = vmatmul.mubr.bf16.gmra.mrb[0].mxu0 %v339
  %v509 = vpop.f32.mrb[0].mxu0
  %v510 = vadd.f32 %v369, %v509
  %v511 = vpop.f32.mrb[0].mxu0
  %v512 = vpop.f32.mrb[0].mxu0
  %v513 = vadd.f32 %v369, %v512
  %v514 = vpop.f32.mrb[0].mxu0
  %515 = vmatprep.mubr.bf16.mxu0 0
  %516 = vmatmul.mubr.bf16.gmra.mrb[0].mxu0 %v340
  %v517 = vpop.f32.mrb[0].mxu0
  %v518 = vadd.f32 %v369, %v517
  %v519 = vpop.f32.mrb[0].mxu0
  %v520 = vpop.f32.mrb[0].mxu0
  %v521 = vadd.f32 %v369, %v520
  %v522 = vpop.f32.mrb[0].mxu0
  %523 = vmatprep.mubr.bf16.mxu0 0
  %524 = vmatmul.mubr.bf16.gmra.mrb[0].mxu0 %v341
  %v525 = vpop.f32.mrb[0].mxu0
  %v526 = vadd.f32 %v369, %v525
  %v527 = vpop.f32.mrb[0].mxu0
  %v528 = vpop.f32.mrb[0].mxu0
  %v529 = vadd.f32 %v369, %v528
  %v530 = vpop.f32.mrb[0].mxu0
  %531 = vmatprep.mubr.bf16.mxu0 0
  %532 = vmatmul.mubr.bf16.gmra.mrb[0].mxu0 %v342
  %v533 = vpop.f32.mrb[0].mxu0
  %v534 = vadd.f32 %v369, %v533
  %v535 = vpop.f32.mrb[0].mxu0
  %v536 = vpop.f32.mrb[0].mxu0
  %v537 = vadd.f32 %v369, %v536
  %v538 = vpop.f32.mrb[0].mxu0
  %539 = vmatprep.mubr.bf16.mxu0 0
  %540 = vmatmul.mubr.bf16.gmra.mrb[0].mxu0 %v343
  %v541 = vpop.f32.mrb[0].mxu0
  %v542 = vadd.f32 %v369, %v541
  %v543 = vpop.f32.mrb[0].mxu0
  %v544 = vpop.f32.mrb[0].mxu0
  %v545 = vadd.f32 %v369, %v544
  %v546 = vpop.f32.mrb[0].mxu0
  %547 = vmatprep.mubr.bf16.mxu0 0
  %548 = vmatmul.mubr.bf16.gmra.mrb[0].mxu0 %v344
  %v549 = vpop.f32.mrb[0].mxu0
  %v550 = vadd.f32 %v369, %v549
  %v551 = vpop.f32.mrb[0].mxu0
  %v552 = vpop.f32.mrb[0].mxu0
  %v553 = vadd.f32 %v369, %v552
  %v554 = vpop.f32.mrb[0].mxu0
  %555 = vmatprep.mubr.bf16.mxu0 0
  %556 = vmatmul.mubr.bf16.gmra.mrb[0].mxu0 %v345
  %v557 = vpop.f32.mrb[0].mxu0
  %v558 = vadd.f32 %v369, %v557
  %v559 = vpop.f32.mrb[0].mxu0
  %v560 = vpop.f32.mrb[0].mxu0
  %v561 = vadd.f32 %v369, %v560
  %v562 = vpop.f32.mrb[0].mxu0
  %563 = vmatprep.mubr.bf16.mxu0 0
  %564 = vmatmul.mubr.bf16.gmra.mrb[0].mxu0 %v346
  %v565 = vpop.f32.mrb[0].mxu0
  %v566 = vadd.f32 %v369, %v565
  %v567 = vpop.f32.mrb[0].mxu0
  %v568 = vpop.f32.mrb[0].mxu0
  %v569 = vadd.f32 %v369, %v568
  %v570 = vpop.f32.mrb[0].mxu0
  %571 = vmatprep.mubr.bf16.mxu0 0
  %572 = vmatmul.mubr.bf16.gmra.mrb[0].mxu0 %v347
  %v573 = vpop.f32.mrb[0].mxu0
  %v574 = vadd.f32 %v369, %v573
  %v575 = vpop.f32.mrb[0].mxu0
  %v576 = vpop.f32.mrb[0].mxu0
  %v577 = vadd.f32 %v369, %v576
  %v578 = vpop.f32.mrb[0].mxu0
  %579 = vdwg.mxu0
  %v580 = vmax.f32 %v454, 0.0
  %v581 = vmax.f32 %v457, 0.0
  %v582 = vmax.f32 %v462, 0.0
  %v583 = vmax.f32 %v465, 0.0
  %v584 = vmax.f32 %v470, 0.0
  %v585 = vmax.f32 %v473, 0.0
  %v586 = vmax.f32 %v478, 0.0
  %v587 = vmax.f32 %v481, 0.0
  %v588 = vmax.f32 %v486, 0.0
  %v589 = vmax.f32 %v489, 0.0
  %v590 = vmax.f32 %v494, 0.0
  %v591 = vmax.f32 %v497, 0.0
  %v592 = vmax.f32 %v502, 0.0
  %v593 = vmax.f32 %v505, 0.0
  %v594 = vmax.f32 %v510, 0.0
  %v595 = vmax.f32 %v513, 0.0
  %v596 = vmax.f32 %v518, 0.0
  %v597 = vmax.f32 %v521, 0.0
  %v598 = vmax.f32 %v526, 0.0
  %v599 = vmax.f32 %v529, 0.0
  %v600 = vmax.f32 %v534, 0.0
  %v601 = vmax.f32 %v537, 0.0
  %v602 = vmax.f32 %v542, 0.0
  %v603 = vmax.f32 %v545, 0.0
  %v604 = vmax.f32 %v550, 0.0
  %v605 = vmax.f32 %v553, 0.0
  %v606 = vmax.f32 %v558, 0.0
  %v607 = vmax.f32 %v561, 0.0
  %v608 = vmax.f32 %v566, 0.0
  %v609 = vmax.f32 %v569, 0.0
  %v610 = vmax.f32 %v574, 0.0
  %v611 = vmax.f32 %v577, 0.0
  %v612 = vpack.c.bf16 %v581, %v580
  %v613 = vpack.c.bf16 %v583, %v582
  %v614 = vpack.c.bf16 %v585, %v584
  %v615 = vpack.c.bf16 %v587, %v586
  %v616 = vpack.c.bf16 %v589, %v588
  %v617 = vpack.c.bf16 %v591, %v590
  %v618 = vpack.c.bf16 %v593, %v592
  %v619 = vpack.c.bf16 %v595, %v594
  %v620 = vpack.c.bf16 %v597, %v596
  %v621 = vpack.c.bf16 %v599, %v598
  %v622 = vpack.c.bf16 %v601, %v600
  %v623 = vpack.c.bf16 %v603, %v602
  %v624 = vpack.c.bf16 %v605, %v604
  %v625 = vpack.c.bf16 %v607, %v606
  %v626 = vpack.c.bf16 %v609, %v608
  %v627 = vpack.c.bf16 %v611, %v610
  %v628 = vld [vmem:[%s5] sm:$0xf]
  %v629 = vld [vmem:[%s5 + $0x4] sm:$0xf]
  %v630 = vld [vmem:[%s5 + $0x8] sm:$0xf]
  %v631 = vld [vmem:[%s5 + $0xc] sm:$0xf]
  %v632 = vld [vmem:[%s5 + $0x10] sm:$0xf]
  %v633 = vld [vmem:[%s5 + $0x14] sm:$0xf]
  %v634 = vld [vmem:[%s5 + $0x18] sm:$0xf]
  %v635 = vld [vmem:[%s5 + $0x1c] sm:$0xf]
  %v636 = vld [vmem:[%s5 + $0x20] sm:$0xf]
  %v637 = vld [vmem:[%s5 + $0x24] sm:$0xf]
  %v638 = vld [vmem:[%s5 + $0x28] sm:$0xf]
  %v639 = vld [vmem:[%s5 + $0x2c] sm:$0xf]
  %v640 = vld [vmem:[%s5 + $0x30] sm:$0xf]
  %v641 = vld [vmem:[%s5 + $0x34] sm:$0xf]
  %v642 = vld [vmem:[%s5 + $0x38] sm:$0xf]
  %v643 = vld [vmem:[%s5 + $0x3c] sm:$0xf]
  %v644 = vld [vmem:[%s6] sm:$0x1]
  %v646 = vlaneseq
  %v647 = vshrl.u32 %v646, 7
  %v648 = vsub.s32 0, %v647
  %v649 = vrot.slane %v644, %v648
  %v667 = vunpack.c.l.b16 %v628
  %v668 = vunpack.c.l.b16 %v629
  %v669 = vunpack.c.l.b16 %v630
  %v670 = vunpack.c.l.b16 %v631
  %v671 = vunpack.c.l.b16 %v632
  %v672 = vunpack.c.l.b16 %v633
  %v673 = vunpack.c.l.b16 %v634
  %v674 = vunpack.c.l.b16 %v635
  %v675 = vunpack.c.l.b16 %v636
  %v676 = vunpack.c.l.b16 %v637
  %v677 = vunpack.c.l.b16 %v638
  %v678 = vunpack.c.l.b16 %v639
  %v679 = vunpack.c.l.b16 %v640
  %v680 = vunpack.c.l.b16 %v641
  %v681 = vunpack.c.l.b16 %v642
  %v682 = vunpack.c.l.b16 %v643
  %v683 = vpack.c.b16 %v668, %v667
  %v684 = vpack.c.b16 %v670, %v669
  %v685 = vpack.c.b16 %v672, %v671
  %v686 = vpack.c.b16 %v674, %v673
  %v687 = vpack.c.b16 %v676, %v675
  %v688 = vpack.c.b16 %v678, %v677
  %v689 = vpack.c.b16 %v680, %v679
  %v690 = vpack.c.b16 %v682, %v681
  %699 = vmatprep.subr.bf16.mxu0 0
  %700 = vmatpush1.bf16.msra.mxu0 %v683
  %701 = vmatprep.subr.bf16.mxu0 0
  %702 = vmatpush1.bf16.msra.mxu0 %v684
  %703 = vmatprep.subr.bf16.mxu0 0
  %704 = vmatpush1.bf16.msra.mxu0 %v685
  %705 = vmatprep.subr.bf16.mxu0 0
  %706 = vmatpush1.bf16.msra.mxu0 %v686
  %707 = vmatprep.subr.bf16.mxu0 0
  %708 = vmatpush1.bf16.msra.mxu0 %v687
  %709 = vmatprep.subr.bf16.mxu0 0
  %710 = vmatpush1.bf16.msra.mxu0 %v688
  %711 = vmatprep.subr.bf16.mxu0 0
  %712 = vmatpush1.bf16.msra.mxu0 %v689
  %713 = vmatprep.subr.bf16.mxu0 0
  %714 = vmatpush1.bf16.msra.mxu0 %v690
  %715 = vmatprep.subr.bf16.mxu0 0
  %716 = vmatpush1.bf16.msra.mxu0 0
  %717 = vmatprep.subr.bf16.mxu0 0
  %718 = vmatpush1.bf16.msra.mxu0 0
  %719 = vmatprep.subr.bf16.mxu0 0
  %720 = vmatpush1.bf16.msra.mxu0 0
  %721 = vmatprep.subr.bf16.mxu0 0
  %722 = vmatpush1.bf16.msra.mxu0 0
  %723 = vmatprep.subr.bf16.mxu0 0
  %724 = vmatpush1.bf16.msra.mxu0 0
  %725 = vmatprep.subr.bf16.mxu0 0
  %726 = vmatpush1.bf16.msra.mxu0 0
  %727 = vmatprep.subr.bf16.mxu0 0
  %728 = vmatpush1.bf16.msra.mxu0 0
  %729 = vmatprep.subr.bf16.mxu0 0
  %730 = vmatpush1.bf16.msra.mxu0 0
  %731 = vmatprep.mubr.bf16.mxu0 0
  %732 = vmatmul.mubr.bf16.gmra.mrb[0].mxu0 %v612
  %v733 = vpop.f32.mrb[0].mxu0
  %v734 = vadd.f32 %v649, %v733
  %v735 = vpop.f32.mrb[0].mxu0
  %v736 = vpop.f32.mrb[0].mxu0
  %v737 = vadd.f32 %v649, %v736
  %v738 = vpop.f32.mrb[0].mxu0
  %739 = vmatprep.mubr.bf16.mxu0 0
  %740 = vmatmul.mubr.bf16.gmra.mrb[0].mxu0 %v613
  %v741 = vpop.f32.mrb[0].mxu0
  %v742 = vadd.f32 %v649, %v741
  %v743 = vpop.f32.mrb[0].mxu0
  %v744 = vpop.f32.mrb[0].mxu0
  %v745 = vadd.f32 %v649, %v744
  %v746 = vpop.f32.mrb[0].mxu0
  %747 = vmatprep.mubr.bf16.mxu0 0
  %748 = vmatmul.mubr.bf16.gmra.mrb[0].mxu0 %v614
  %v749 = vpop.f32.mrb[0].mxu0
  %v750 = vadd.f32 %v649, %v749
  %v751 = vpop.f32.mrb[0].mxu0
  %v752 = vpop.f32.mrb[0].mxu0
  %v753 = vadd.f32 %v649, %v752
  %v754 = vpop.f32.mrb[0].mxu0
  %755 = vmatprep.mubr.bf16.mxu0 0
  %756 = vmatmul.mubr.bf16.gmra.mrb[0].mxu0 %v615
  %v757 = vpop.f32.mrb[0].mxu0
  %v758 = vadd.f32 %v649, %v757
  %v759 = vpop.f32.mrb[0].mxu0
  %v760 = vpop.f32.mrb[0].mxu0
  %v761 = vadd.f32 %v649, %v760
  %v762 = vpop.f32.mrb[0].mxu0
  %763 = vmatprep.mubr.bf16.mxu0 0
  %764 = vmatmul.mubr.bf16.gmra.mrb[0].mxu0 %v616
  %v765 = vpop.f32.mrb[0].mxu0
  %v766 = vadd.f32 %v649, %v765
  %v767 = vpop.f32.mrb[0].mxu0
  %v768 = vpop.f32.mrb[0].mxu0
  %v769 = vadd.f32 %v649, %v768
  %v770 = vpop.f32.mrb[0].mxu0
  %771 = vmatprep.mubr.bf16.mxu0 0
  %772 = vmatmul.mubr.bf16.gmra.mrb[0].mxu0 %v617
  %v773 = vpop.f32.mrb[0].mxu0
  %v774 = vadd.f32 %v649, %v773
  %v775 = vpop.f32.mrb[0].mxu0
  %v776 = vpop.f32.mrb[0].mxu0
  %v777 = vadd.f32 %v649, %v776
  %v778 = vpop.f32.mrb[0].mxu0
  %779 = vmatprep.mubr.bf16.mxu0 0
  %780 = vmatmul.mubr.bf16.gmra.mrb[0].mxu0 %v618
  %v781 = vpop.f32.mrb[0].mxu0
  %v782 = vadd.f32 %v649, %v781
  %v783 = vpop.f32.mrb[0].mxu0
  %v784 = vpop.f32.mrb[0].mxu0
  %v785 = vadd.f32 %v649, %v784
  %v786 = vpop.f32.mrb[0].mxu0
  %787 = vmatprep.mubr.bf16.mxu0 0
  %788 = vmatmul.mubr.bf16.gmra.mrb[0].mxu0 %v619
  %v789 = vpop.f32.mrb[0].mxu0
  %v790 = vadd.f32 %v649, %v789
  %v791 = vpop.f32.mrb[0].mxu0
  %v792 = vpop.f32.mrb[0].mxu0
  %v793 = vadd.f32 %v649, %v792
  %v794 = vpop.f32.mrb[0].mxu0
  %795 = vmatprep.mubr.bf16.mxu0 0
  %796 = vmatmul.mubr.bf16.gmra.mrb[0].mxu0 %v620
  %v797 = vpop.f32.mrb[0].mxu0
  %v798 = vadd.f32 %v649, %v797
  %v799 = vpop.f32.mrb[0].mxu0
  %v800 = vpop.f32.mrb[0].mxu0
  %v801 = vadd.f32 %v649, %v800
  %v802 = vpop.f32.mrb[0].mxu0
  %803 = vmatprep.mubr.bf16.mxu0 0
  %804 = vmatmul.mubr.bf16.gmra.mrb[0].mxu0 %v621
  %v805 = vpop.f32.mrb[0].mxu0
  %v806 = vadd.f32 %v649, %v805
  %v807 = vpop.f32.mrb[0].mxu0
  %v808 = vpop.f32.mrb[0].mxu0
  %v809 = vadd.f32 %v649, %v808
  %v810 = vpop.f32.mrb[0].mxu0
  %811 = vmatprep.mubr.bf16.mxu0 0
  %812 = vmatmul.mubr.bf16.gmra.mrb[0].mxu0 %v622
  %v813 = vpop.f32.mrb[0].mxu0
  %v814 = vadd.f32 %v649, %v813
  %v815 = vpop.f32.mrb[0].mxu0
  %v816 = vpop.f32.mrb[0].mxu0
  %v817 = vadd.f32 %v649, %v816
  %v818 = vpop.f32.mrb[0].mxu0
  %819 = vmatprep.mubr.bf16.mxu0 0
  %820 = vmatmul.mubr.bf16.gmra.mrb[0].mxu0 %v623
  %v821 = vpop.f32.mrb[0].mxu0
  %v822 = vadd.f32 %v649, %v821
  %v823 = vpop.f32.mrb[0].mxu0
  %v824 = vpop.f32.mrb[0].mxu0
  %v825 = vadd.f32 %v649, %v824
  %v826 = vpop.f32.mrb[0].mxu0
  %827 = vmatprep.mubr.bf16.mxu0 0
  %828 = vmatmul.mubr.bf16.gmra.mrb[0].mxu0 %v624
  %v829 = vpop.f32.mrb[0].mxu0
  %v830 = vadd.f32 %v649, %v829
  %v831 = vpop.f32.mrb[0].mxu0
  %v832 = vpop.f32.mrb[0].mxu0
  %v833 = vadd.f32 %v649, %v832
  %v834 = vpop.f32.mrb[0].mxu0
  %835 = vmatprep.mubr.bf16.mxu0 0
  %836 = vmatmul.mubr.bf16.gmra.mrb[0].mxu0 %v625
  %v837 = vpop.f32.mrb[0].mxu0
  %v838 = vadd.f32 %v649, %v837
  %v839 = vpop.f32.mrb[0].mxu0
  %v840 = vpop.f32.mrb[0].mxu0
  %v841 = vadd.f32 %v649, %v840
  %v842 = vpop.f32.mrb[0].mxu0
  %843 = vmatprep.mubr.bf16.mxu0 0
  %844 = vmatmul.mubr.bf16.gmra.mrb[0].mxu0 %v626
  %v845 = vpop.f32.mrb[0].mxu0
  %v846 = vadd.f32 %v649, %v845
  %v847 = vpop.f32.mrb[0].mxu0
  %v848 = vpop.f32.mrb[0].mxu0
  %v849 = vadd.f32 %v649, %v848
  %v850 = vpop.f32.mrb[0].mxu0
  %851 = vmatprep.mubr.bf16.mxu0 0
  %852 = vmatmul.mubr.bf16.gmra.mrb[0].mxu0 %v627
  %v853 = vpop.f32.mrb[0].mxu0
  %v854 = vadd.f32 %v649, %v853
  %v855 = vpop.f32.mrb[0].mxu0
  %v856 = vpop.f32.mrb[0].mxu0
  %v857 = vadd.f32 %v649, %v856
  %v858 = vpop.f32.mrb[0].mxu0
  %859 = vdwg.mxu0
  %vm860 = vcmask 31744
  %v861 = vsel %vm860, %v734, -inf
  %862 = vmax.xlane.f32.xlu0 %v861
  %v863 = vpop.xlane.xlu0 %862
  %v864 = vsel %vm860, %v737, -inf
  %865 = vmax.xlane.f32.xlu0 %v864
  %v866 = vpop.xlane.xlu0 %865
  %v867 = vsel %vm860, %v742, -inf
  %868 = vmax.xlane.f32.xlu0 %v867
  %v869 = vpop.xlane.xlu0 %868
  %v870 = vsel %vm860, %v745, -inf
  %871 = vmax.xlane.f32.xlu0 %v870
  %v872 = vpop.xlane.xlu0 %871
  %v873 = vsel %vm860, %v750, -inf
  %874 = vmax.xlane.f32.xlu0 %v873
  %v875 = vpop.xlane.xlu0 %874
  %v876 = vsel %vm860, %v753, -inf
  %877 = vmax.xlane.f32.xlu0 %v876
  %v878 = vpop.xlane.xlu0 %877
  %v879 = vsel %vm860, %v758, -inf
  %880 = vmax.xlane.f32.xlu0 %v879
  %v881 = vpop.xlane.xlu0 %880
  %v882 = vsel %vm860, %v761, -inf
  %883 = vmax.xlane.f32.xlu0 %v882
  %v884 = vpop.xlane.xlu0 %883
  %v885 = vsel %vm860, %v766, -inf
  %886 = vmax.xlane.f32.xlu0 %v885
  %v887 = vpop.xlane.xlu0 %886
  %v888 = vsel %vm860, %v769, -inf
  %889 = vmax.xlane.f32.xlu0 %v888
  %v890 = vpop.xlane.xlu0 %889
  %v891 = vsel %vm860, %v774, -inf
  %892 = vmax.xlane.f32.xlu0 %v891
  %v893 = vpop.xlane.xlu0 %892
  %v894 = vsel %vm860, %v777, -inf
  %895 = vmax.xlane.f32.xlu0 %v894
  %v896 = vpop.xlane.xlu0 %895
  %v897 = vsel %vm860, %v782, -inf
  %898 = vmax.xlane.f32.xlu0 %v897
  %v899 = vpop.xlane.xlu0 %898
  %v900 = vsel %vm860, %v785, -inf
  %901 = vmax.xlane.f32.xlu0 %v900
  %v902 = vpop.xlane.xlu0 %901
  %v903 = vsel %vm860, %v790, -inf
  %904 = vmax.xlane.f32.xlu0 %v903
  %v905 = vpop.xlane.xlu0 %904
  %v906 = vsel %vm860, %v793, -inf
  %907 = vmax.xlane.f32.xlu0 %v906
  %v908 = vpop.xlane.xlu0 %907
  %v909 = vsel %vm860, %v798, -inf
  %910 = vmax.xlane.f32.xlu0 %v909
  %v911 = vpop.xlane.xlu0 %910
  %v912 = vsel %vm860, %v801, -inf
  %913 = vmax.xlane.f32.xlu0 %v912
  %v914 = vpop.xlane.xlu0 %913
  %v915 = vsel %vm860, %v806, -inf
  %916 = vmax.xlane.f32.xlu0 %v915
  %v917 = vpop.xlane.xlu0 %916
  %v918 = vsel %vm860, %v809, -inf
  %919 = vmax.xlane.f32.xlu0 %v918
  %v920 = vpop.xlane.xlu0 %919
  %v921 = vsel %vm860, %v814, -inf
  %922 = vmax.xlane.f32.xlu0 %v921
  %v923 = vpop.xlane.xlu0 %922
  %v924 = vsel %vm860, %v817, -inf
  %925 = vmax.xlane.f32.xlu0 %v924
  %v926 = vpop.xlane.xlu0 %925
  %v927 = vsel %vm860, %v822, -inf
  %928 = vmax.xlane.f32.xlu0 %v927
  %v929 = vpop.xlane.xlu0 %928
  %v930 = vsel %vm860, %v825, -inf
  %931 = vmax.xlane.f32.xlu0 %v930
  %v932 = vpop.xlane.xlu0 %931
  %v933 = vsel %vm860, %v830, -inf
  %934 = vmax.xlane.f32.xlu0 %v933
  %v935 = vpop.xlane.xlu0 %934
  %v936 = vsel %vm860, %v833, -inf
  %937 = vmax.xlane.f32.xlu0 %v936
  %v938 = vpop.xlane.xlu0 %937
  %v939 = vsel %vm860, %v838, -inf
  %940 = vmax.xlane.f32.xlu0 %v939
  %v941 = vpop.xlane.xlu0 %940
  %v942 = vsel %vm860, %v841, -inf
  %943 = vmax.xlane.f32.xlu0 %v942
  %v944 = vpop.xlane.xlu0 %943
  %v945 = vsel %vm860, %v846, -inf
  %946 = vmax.xlane.f32.xlu0 %v945
  %v947 = vpop.xlane.xlu0 %946
  %v948 = vsel %vm860, %v849, -inf
  %949 = vmax.xlane.f32.xlu0 %v948
  %v950 = vpop.xlane.xlu0 %949
  %v951 = vsel %vm860, %v854, -inf
  %952 = vmax.xlane.f32.xlu0 %v951
  %v953 = vpop.xlane.xlu0 %952
  %v954 = vsel %vm860, %v857, -inf
  %955 = vmax.xlane.f32.xlu0 %v954
  %v956 = vpop.xlane.xlu0 %955
  %v957 = vsub.f32 %v734, %v863
  %v958 = vsub.f32 %v737, %v866
  %v959 = vsub.f32 %v742, %v869
  %v960 = vsub.f32 %v745, %v872
  %v961 = vsub.f32 %v750, %v875
  %v962 = vsub.f32 %v753, %v878
  %v963 = vsub.f32 %v758, %v881
  %v964 = vsub.f32 %v761, %v884
  %v965 = vsub.f32 %v766, %v887
  %v966 = vsub.f32 %v769, %v890
  %v967 = vsub.f32 %v774, %v893
  %v968 = vsub.f32 %v777, %v896
  %v969 = vsub.f32 %v782, %v899
  %v970 = vsub.f32 %v785, %v902
  %v971 = vsub.f32 %v790, %v905
  %v972 = vsub.f32 %v793, %v908
  %v973 = vsub.f32 %v798, %v911
  %v974 = vsub.f32 %v801, %v914
  %v975 = vsub.f32 %v806, %v917
  %v976 = vsub.f32 %v809, %v920
  %v977 = vsub.f32 %v814, %v923
  %v978 = vsub.f32 %v817, %v926
  %v979 = vsub.f32 %v822, %v929
  %v980 = vsub.f32 %v825, %v932
  %v981 = vsub.f32 %v830, %v935
  %v982 = vsub.f32 %v833, %v938
  %v983 = vsub.f32 %v838, %v941
  %v984 = vsub.f32 %v841, %v944
  %v985 = vsub.f32 %v846, %v947
  %v986 = vsub.f32 %v849, %v950
  %v987 = vsub.f32 %v854, %v953
  %v988 = vsub.f32 %v857, %v956
  %v989 = vmul.f32 %v957, 1.442695
  %v990 = vpow.pop %v989
  %v991 = vmul.f32 %v958, 1.442695
  %v992 = vpow.pop %v991
  %v993 = vmul.f32 %v959, 1.442695
  %v994 = vpow.pop %v993
  %v995 = vmul.f32 %v960, 1.442695
  %v996 = vpow.pop %v995
  %v997 = vmul.f32 %v961, 1.442695
  %v998 = vpow.pop %v997
  %v999 = vmul.f32 %v962, 1.442695
  %v1000 = vpow.pop %v999
  %v1001 = vmul.f32 %v963, 1.442695
  %v1002 = vpow.pop %v1001
  %v1003 = vmul.f32 %v964, 1.442695
  %v1004 = vpow.pop %v1003
  %v1005 = vmul.f32 %v965, 1.442695
  %v1006 = vpow.pop %v1005
  %v1007 = vmul.f32 %v966, 1.442695
  %v1008 = vpow.pop %v1007
  %v1009 = vmul.f32 %v967, 1.442695
  %v1010 = vpow.pop %v1009
  %v1011 = vmul.f32 %v968, 1.442695
  %v1012 = vpow.pop %v1011
  %v1013 = vmul.f32 %v969, 1.442695
  %v1014 = vpow.pop %v1013
  %v1015 = vmul.f32 %v970, 1.442695
  %v1016 = vpow.pop %v1015
  %v1017 = vmul.f32 %v971, 1.442695
  %v1018 = vpow.pop %v1017
  %v1019 = vmul.f32 %v972, 1.442695
  %v1020 = vpow.pop %v1019
  %v1021 = vmul.f32 %v973, 1.442695
  %v1022 = vpow.pop %v1021
  %v1023 = vmul.f32 %v974, 1.442695
  %v1024 = vpow.pop %v1023
  %v1025 = vmul.f32 %v975, 1.442695
  %v1026 = vpow.pop %v1025
  %v1027 = vmul.f32 %v976, 1.442695
  %v1028 = vpow.pop %v1027
  %v1029 = vmul.f32 %v977, 1.442695
  %v1030 = vpow.pop %v1029
  %v1031 = vmul.f32 %v978, 1.442695
  %v1032 = vpow.pop %v1031
  %v1033 = vmul.f32 %v979, 1.442695
  %v1034 = vpow.pop %v1033
  %v1035 = vmul.f32 %v980, 1.442695
  %v1036 = vpow.pop %v1035
  %v1037 = vmul.f32 %v981, 1.442695
  %v1038 = vpow.pop %v1037
  %v1039 = vmul.f32 %v982, 1.442695
  %v1040 = vpow.pop %v1039
  %v1041 = vmul.f32 %v983, 1.442695
  %v1042 = vpow.pop %v1041
  %v1043 = vmul.f32 %v984, 1.442695
  %v1044 = vpow.pop %v1043
  %v1045 = vmul.f32 %v985, 1.442695
  %v1046 = vpow.pop %v1045
  %v1047 = vmul.f32 %v986, 1.442695
  %v1048 = vpow.pop %v1047
  %v1049 = vmul.f32 %v987, 1.442695
  %v1050 = vpow.pop %v1049
  %v1051 = vmul.f32 %v988, 1.442695
  %v1052 = vpow.pop %v1051
  %v1053 = vsel %vm860, %v990, 0.0
  %1054 = vadd.xlane.f32.xlu0 %v1053
  %v1055 = vpop.xlane.xlu0 %1054
  %v1056 = vsel %vm860, %v992, 0.0
  %1057 = vadd.xlane.f32.xlu0 %v1056
  %v1058 = vpop.xlane.xlu0 %1057
  %v1059 = vsel %vm860, %v994, 0.0
  %1060 = vadd.xlane.f32.xlu0 %v1059
  %v1061 = vpop.xlane.xlu0 %1060
  %v1062 = vsel %vm860, %v996, 0.0
  %1063 = vadd.xlane.f32.xlu0 %v1062
  %v1064 = vpop.xlane.xlu0 %1063
  %v1065 = vsel %vm860, %v998, 0.0
  %1066 = vadd.xlane.f32.xlu0 %v1065
  %v1067 = vpop.xlane.xlu0 %1066
  %v1068 = vsel %vm860, %v1000, 0.0
  %1069 = vadd.xlane.f32.xlu0 %v1068
  %v1070 = vpop.xlane.xlu0 %1069
  %v1071 = vsel %vm860, %v1002, 0.0
  %1072 = vadd.xlane.f32.xlu0 %v1071
  %v1073 = vpop.xlane.xlu0 %1072
  %v1074 = vsel %vm860, %v1004, 0.0
  %1075 = vadd.xlane.f32.xlu0 %v1074
  %v1076 = vpop.xlane.xlu0 %1075
  %v1077 = vsel %vm860, %v1006, 0.0
  %1078 = vadd.xlane.f32.xlu0 %v1077
  %v1079 = vpop.xlane.xlu0 %1078
  %v1080 = vsel %vm860, %v1008, 0.0
  %1081 = vadd.xlane.f32.xlu0 %v1080
  %v1082 = vpop.xlane.xlu0 %1081
  %v1083 = vsel %vm860, %v1010, 0.0
  %1084 = vadd.xlane.f32.xlu0 %v1083
  %v1085 = vpop.xlane.xlu0 %1084
  %v1086 = vsel %vm860, %v1012, 0.0
  %1087 = vadd.xlane.f32.xlu0 %v1086
  %v1088 = vpop.xlane.xlu0 %1087
  %v1089 = vsel %vm860, %v1014, 0.0
  %1090 = vadd.xlane.f32.xlu0 %v1089
  %v1091 = vpop.xlane.xlu0 %1090
  %v1092 = vsel %vm860, %v1016, 0.0
  %1093 = vadd.xlane.f32.xlu0 %v1092
  %v1094 = vpop.xlane.xlu0 %1093
  %v1095 = vsel %vm860, %v1018, 0.0
  %1096 = vadd.xlane.f32.xlu0 %v1095
  %v1097 = vpop.xlane.xlu0 %1096
  %v1098 = vsel %vm860, %v1020, 0.0
  %1099 = vadd.xlane.f32.xlu0 %v1098
  %v1100 = vpop.xlane.xlu0 %1099
  %v1101 = vsel %vm860, %v1022, 0.0
  %1102 = vadd.xlane.f32.xlu0 %v1101
  %v1103 = vpop.xlane.xlu0 %1102
  %v1104 = vsel %vm860, %v1024, 0.0
  %1105 = vadd.xlane.f32.xlu0 %v1104
  %v1106 = vpop.xlane.xlu0 %1105
  %v1107 = vsel %vm860, %v1026, 0.0
  %1108 = vadd.xlane.f32.xlu0 %v1107
  %v1109 = vpop.xlane.xlu0 %1108
  %v1110 = vsel %vm860, %v1028, 0.0
  %1111 = vadd.xlane.f32.xlu0 %v1110
  %v1112 = vpop.xlane.xlu0 %1111
  %v1113 = vsel %vm860, %v1030, 0.0
  %1114 = vadd.xlane.f32.xlu0 %v1113
  %v1115 = vpop.xlane.xlu0 %1114
  %v1116 = vsel %vm860, %v1032, 0.0
  %1117 = vadd.xlane.f32.xlu0 %v1116
  %v1118 = vpop.xlane.xlu0 %1117
  %v1119 = vsel %vm860, %v1034, 0.0
  %1120 = vadd.xlane.f32.xlu0 %v1119
  %v1121 = vpop.xlane.xlu0 %1120
  %v1122 = vsel %vm860, %v1036, 0.0
  %1123 = vadd.xlane.f32.xlu0 %v1122
  %v1124 = vpop.xlane.xlu0 %1123
  %v1125 = vsel %vm860, %v1038, 0.0
  %1126 = vadd.xlane.f32.xlu0 %v1125
  %v1127 = vpop.xlane.xlu0 %1126
  %v1128 = vsel %vm860, %v1040, 0.0
  %1129 = vadd.xlane.f32.xlu0 %v1128
  %v1130 = vpop.xlane.xlu0 %1129
  %v1131 = vsel %vm860, %v1042, 0.0
  %1132 = vadd.xlane.f32.xlu0 %v1131
  %v1133 = vpop.xlane.xlu0 %1132
  %v1134 = vsel %vm860, %v1044, 0.0
  %1135 = vadd.xlane.f32.xlu0 %v1134
  %v1136 = vpop.xlane.xlu0 %1135
  %v1137 = vsel %vm860, %v1046, 0.0
  %1138 = vadd.xlane.f32.xlu0 %v1137
  %v1139 = vpop.xlane.xlu0 %1138
  %v1140 = vsel %vm860, %v1048, 0.0
  %1141 = vadd.xlane.f32.xlu0 %v1140
  %v1142 = vpop.xlane.xlu0 %1141
  %v1143 = vsel %vm860, %v1050, 0.0
  %1144 = vadd.xlane.f32.xlu0 %v1143
  %v1145 = vpop.xlane.xlu0 %1144
  %v1146 = vsel %vm860, %v1052, 0.0
  %1147 = vadd.xlane.f32.xlu0 %v1146
  %v1148 = vpop.xlane.xlu0 %1147
  %v1149 = vrcp.pop %v1055
  %v1150 = vmul.f32 %v990, %v1149
  %v1151 = vrcp.pop %v1058
  %v1152 = vmul.f32 %v992, %v1151
  %v1153 = vrcp.pop %v1061
  %v1154 = vmul.f32 %v994, %v1153
  %v1155 = vrcp.pop %v1064
  %v1156 = vmul.f32 %v996, %v1155
  %v1157 = vrcp.pop %v1067
  %v1158 = vmul.f32 %v998, %v1157
  %v1159 = vrcp.pop %v1070
  %v1160 = vmul.f32 %v1000, %v1159
  %v1161 = vrcp.pop %v1073
  %v1162 = vmul.f32 %v1002, %v1161
  %v1163 = vrcp.pop %v1076
  %v1164 = vmul.f32 %v1004, %v1163
  %v1165 = vrcp.pop %v1079
  %v1166 = vmul.f32 %v1006, %v1165
  %v1167 = vrcp.pop %v1082
  %v1168 = vmul.f32 %v1008, %v1167
  %v1169 = vrcp.pop %v1085
  %v1170 = vmul.f32 %v1010, %v1169
  %v1171 = vrcp.pop %v1088
  %v1172 = vmul.f32 %v1012, %v1171
  %v1173 = vrcp.pop %v1091
  %v1174 = vmul.f32 %v1014, %v1173
  %v1175 = vrcp.pop %v1094
  %v1176 = vmul.f32 %v1016, %v1175
  %v1177 = vrcp.pop %v1097
  %v1178 = vmul.f32 %v1018, %v1177
  %v1179 = vrcp.pop %v1100
  %v1180 = vmul.f32 %v1020, %v1179
  %v1181 = vrcp.pop %v1103
  %v1182 = vmul.f32 %v1022, %v1181
  %v1183 = vrcp.pop %v1106
  %v1184 = vmul.f32 %v1024, %v1183
  %v1185 = vrcp.pop %v1109
  %v1186 = vmul.f32 %v1026, %v1185
  %v1187 = vrcp.pop %v1112
  %v1188 = vmul.f32 %v1028, %v1187
  %v1189 = vrcp.pop %v1115
  %v1190 = vmul.f32 %v1030, %v1189
  %v1191 = vrcp.pop %v1118
  %v1192 = vmul.f32 %v1032, %v1191
  %v1193 = vrcp.pop %v1121
  %v1194 = vmul.f32 %v1034, %v1193
  %v1195 = vrcp.pop %v1124
  %v1196 = vmul.f32 %v1036, %v1195
  %v1197 = vrcp.pop %v1127
  %v1198 = vmul.f32 %v1038, %v1197
  %v1199 = vrcp.pop %v1130
  %v1200 = vmul.f32 %v1040, %v1199
  %v1201 = vrcp.pop %v1133
  %v1202 = vmul.f32 %v1042, %v1201
  %v1203 = vrcp.pop %v1136
  %v1204 = vmul.f32 %v1044, %v1203
  %v1205 = vrcp.pop %v1139
  %v1206 = vmul.f32 %v1046, %v1205
  %v1207 = vrcp.pop %v1142
  %v1208 = vmul.f32 %v1048, %v1207
  %v1209 = vrcp.pop %v1145
  %v1210 = vmul.f32 %v1050, %v1209
  %v1211 = vrcp.pop %v1148
  %v1212 = vmul.f32 %v1052, %v1211
  %1213 = vst.msk [vmem:[%s7] sm:$0xff] %vm860, %v1150
  %1214 = vst.msk [vmem:[%s7 + $0x8] sm:$0xff] %vm860, %v1152
  %1215 = vst.msk [vmem:[%s7 + $0x10] sm:$0xff] %vm860, %v1154
  %1216 = vst.msk [vmem:[%s7 + $0x18] sm:$0xff] %vm860, %v1156
  %1217 = vst.msk [vmem:[%s7 + $0x20] sm:$0xff] %vm860, %v1158
  %1218 = vst.msk [vmem:[%s7 + $0x28] sm:$0xff] %vm860, %v1160
  %1219 = vst.msk [vmem:[%s7 + $0x30] sm:$0xff] %vm860, %v1162
  %1220 = vst.msk [vmem:[%s7 + $0x38] sm:$0xff] %vm860, %v1164
  %1221 = vst.msk [vmem:[%s7 + $0x40] sm:$0xff] %vm860, %v1166
  %1222 = vst.msk [vmem:[%s7 + $0x48] sm:$0xff] %vm860, %v1168
  %1223 = vst.msk [vmem:[%s7 + $0x50] sm:$0xff] %vm860, %v1170
  %1224 = vst.msk [vmem:[%s7 + $0x58] sm:$0xff] %vm860, %v1172
  %1225 = vst.msk [vmem:[%s7 + $0x60] sm:$0xff] %vm860, %v1174
  %1226 = vst.msk [vmem:[%s7 + $0x68] sm:$0xff] %vm860, %v1176
  %1227 = vst.msk [vmem:[%s7 + $0x70] sm:$0xff] %vm860, %v1178
  %1228 = vst.msk [vmem:[%s7 + $0x78] sm:$0xff] %vm860, %v1180
  %1229 = vst.msk [vmem:[%s7 + $0x80] sm:$0xff] %vm860, %v1182
  %1230 = vst.msk [vmem:[%s7 + $0x88] sm:$0xff] %vm860, %v1184
  %1231 = vst.msk [vmem:[%s7 + $0x90] sm:$0xff] %vm860, %v1186
  %1232 = vst.msk [vmem:[%s7 + $0x98] sm:$0xff] %vm860, %v1188
  %1233 = vst.msk [vmem:[%s7 + $0xa0] sm:$0xff] %vm860, %v1190
  %1234 = vst.msk [vmem:[%s7 + $0xa8] sm:$0xff] %vm860, %v1192
  %1235 = vst.msk [vmem:[%s7 + $0xb0] sm:$0xff] %vm860, %v1194
  %1236 = vst.msk [vmem:[%s7 + $0xb8] sm:$0xff] %vm860, %v1196
  %1237 = vst.msk [vmem:[%s7 + $0xc0] sm:$0xff] %vm860, %v1198
  %1238 = vst.msk [vmem:[%s7 + $0xc8] sm:$0xff] %vm860, %v1200
  %1239 = vst.msk [vmem:[%s7 + $0xd0] sm:$0xff] %vm860, %v1202
  %1240 = vst.msk [vmem:[%s7 + $0xd8] sm:$0xff] %vm860, %v1204
  %1241 = vst.msk [vmem:[%s7 + $0xe0] sm:$0xff] %vm860, %v1206
  %1242 = vst.msk [vmem:[%s7 + $0xe8] sm:$0xff] %vm860, %v1208
  %1243 = vst.msk [vmem:[%s7 + $0xf0] sm:$0xff] %vm860, %v1210
  %1244 = vst.msk [vmem:[%s7 + $0xf8] sm:$0xff] %vm860, %v1212
  // Predicated region
  $region30: #{actor_forward.1} parent=0 // pred_check
    _
  $region31: #{actor_forward.1} parent=0 // pred_check_branch
    %1246 = sbr.rel (0) target = $region33
  $region32: #{actor_forward.1} parent=0 // pred_region
    _
  $region33: #{actor_forward.1} parent=0 // pred_fallthru
    _
  // Predicated region
  $region34: #{actor_forward.1} parent=0 // pred_check
    _
  $region35: #{actor_forward.1} parent=0 // pred_check_branch
    %1248 = sbr.rel (0) target = $region37
  $region36: #{actor_forward.1} parent=0 // pred_region
    _
  $region37: #{actor_forward.1} parent=0 // pred_fallthru
    _

</llo_original>
